<compile_context>
chip_gen: v5e
topology: v5e:2x2
jax: 0.10.0
libtpu: 0.0.40
codegen_flags: <defaults>
</compile_context>

<pallas_src>
import jax
import jax.numpy as jnp
from jax.experimental import pallas as pl
from jax.experimental.pallas import tpu as pltpu

BATCH = 1
IN_FEATURES = 3
OUT_FEATURES = 3


def torchnet_kernel(x_ref, b_ref, w_ref, o_ref):
    # x_ref: (IN_FEATURES,)               float32, SMEM
    # b_ref: (OUT_FEATURES,)              float32, SMEM
    # w_ref: (IN_FEATURES, OUT_FEATURES)  float32, VMEM
    # o_ref: (1,)                         float32, SMEM

    # --- batch == 1 matmul as scalar-splat MACs on the VPU (off the MXU) ---
    # Rows are sliced straight off the ref -> aligned vector loads, no
    # relayout of a pre-loaded vreg.  Only valid because BATCH == 1.
    out = (x_ref[0] * w_ref[0:1, :]
           + x_ref[1] * w_ref[1:2, :]
           + x_ref[2] * w_ref[2:3, :])                    # (1, OUT_FEATURES)

    # --- ReLU ---
    out = jnp.maximum(out, 0.0)

    # --- folded epilogue ---
    # sum(log_softmax(out) + b) = sum(out) - OUT_FEATURES*logsumexp(out) + sum(b)
    m = jnp.max(out, axis=1, keepdims=True)               # (1, 1)
    e = jnp.sum(jnp.exp(out - m), axis=1, keepdims=True)  # (1, 1)
    s = jnp.sum(out, axis=1, keepdims=True)               # (1, 1)
    lse = m + jnp.log(e)                                  # (1, 1)
    vec_part = (s - float(OUT_FEATURES) * lse)[0, 0]      # scalar

    b_sum = b_ref[0] + b_ref[1] + b_ref[2]                # scalar SMEM reads
    o_ref[0] = vec_part + b_sum


@jax.jit
def torchnet_forward(x, w, b):
    """x: (1, in_features), w: (in, out), b: (1, out) -> scalar float32."""
    assert BATCH == 1, "scalar-splat matmul in the kernel assumes batch == 1"
    assert x.shape == (BATCH, IN_FEATURES)
    assert w.shape == (IN_FEATURES, OUT_FEATURES)
    assert b.shape == (1, OUT_FEATURES)

    out = pl.pallas_call(
        torchnet_kernel,
        out_shape=jax.ShapeDtypeStruct((1,), jnp.float32),
        in_specs=[
            pl.BlockSpec(memory_space=pltpu.SMEM),   # x -> 1-D SMEM scalars
            pl.BlockSpec(memory_space=pltpu.SMEM),   # b -> 1-D SMEM scalars
            pl.BlockSpec(memory_space=pltpu.VMEM),   # w -> single VMEM block
        ],
        out_specs=pl.BlockSpec(memory_space=pltpu.SMEM),  # (1,) scalar result
    )(x.reshape(IN_FEATURES), b.reshape(OUT_FEATURES), w)
    return out[0]


def torchnet_reference(x, w, b):
    out = x @ w
    out = jnp.maximum(out, 0.0)
    out = jax.nn.log_softmax(out, axis=1)
    return jnp.sum(out + b)


if __name__ == "__main__":
    key = jax.random.PRNGKey(0)
    kx, kw, kb = jax.random.split(key, 3)

    # Deterministic stand-ins for the np.random.randn initializers in __init__.
    x = jax.random.normal(kx, (BATCH, IN_FEATURES), dtype=jnp.float32)
    w = jax.random.normal(kw, (IN_FEATURES, OUT_FEATURES), dtype=jnp.float32)
    b = jax.random.normal(kb, (1, OUT_FEATURES), dtype=jnp.float32)

    result = torchnet_forward(x, w, b)
    jax.block_until_ready(result)

    ref = torchnet_reference(x, w, b)
    assert jnp.allclose(result, ref, atol=1e-5, rtol=1e-5), (result, ref)

    print("KERNEL_OK")
</pallas_src>

<mosaic_0001>
module attributes {stable_mosaic.version = 11 : i64} {
  func.func @torchnet_kernel(%arg0: memref<3xf32, #tpu.memory_space<smem>>, %arg1: memref<3xf32, #tpu.memory_space<smem>>, %arg2: memref<3x3xf32, #tpu.memory_space<vmem>>, %arg3: memref<1xf32, #tpu.memory_space<smem>>) attributes {dimension_semantics = [], scalar_prefetch = 0 : i64, scratch_operands = 0 : i64, tpu.core_type = #tpu.core_type<tc>} {
    %c0 = arith.constant 0 : index
    %0 = memref.load %arg0[%c0] : memref<3xf32, #tpu.memory_space<smem>>
    %c0_0 = arith.constant 0 : index
    %c0_1 = arith.constant 0 : index
    %1 = vector.load %arg2[%c0_0, %c0_1] : memref<3x3xf32, #tpu.memory_space<vmem>>, vector<1x3xf32>
    %2 = vector.broadcast %0 : f32 to vector<1x3xf32>
    %3 = arith.mulf %2, %1 : vector<1x3xf32>
    %c1 = arith.constant 1 : index
    %4 = memref.load %arg0[%c1] : memref<3xf32, #tpu.memory_space<smem>>
    %c1_2 = arith.constant 1 : index
    %c0_3 = arith.constant 0 : index
    %5 = vector.load %arg2[%c1_2, %c0_3] : memref<3x3xf32, #tpu.memory_space<vmem>>, vector<1x3xf32>
    %6 = vector.broadcast %4 : f32 to vector<1x3xf32>
    %7 = arith.mulf %6, %5 : vector<1x3xf32>
    %8 = arith.addf %3, %7 : vector<1x3xf32>
    %c2 = arith.constant 2 : index
    %9 = memref.load %arg0[%c2] : memref<3xf32, #tpu.memory_space<smem>>
    %c2_4 = arith.constant 2 : index
    %c0_5 = arith.constant 0 : index
    %10 = vector.load %arg2[%c2_4, %c0_5] : memref<3x3xf32, #tpu.memory_space<vmem>>, vector<1x3xf32>
    %11 = vector.broadcast %9 : f32 to vector<1x3xf32>
    %12 = arith.mulf %11, %10 : vector<1x3xf32>
    %13 = arith.addf %8, %12 : vector<1x3xf32>
    %cst = arith.constant 0.000000e+00 : f32
    %14 = vector.broadcast %cst : f32 to vector<1x3xf32>
    %15 = arith.maximumf %13, %14 : vector<1x3xf32>
    %cst_6 = arith.constant dense<0xFF800000> : vector<1xf32>
    %16 = vector.multi_reduction <maximumf>, %15, %cst_6 [1] : vector<1x3xf32> to vector<1xf32>
    %17 = vector.shape_cast %16 : vector<1xf32> to vector<1x1xf32>
    %18 = vector.broadcast %17 : vector<1x1xf32> to vector<1x3xf32>
    %19 = arith.subf %15, %18 : vector<1x3xf32>
    %20 = math.exp %19 : vector<1x3xf32>
    %cst_7 = arith.constant dense<0.000000e+00> : vector<1xf32>
    %21 = vector.multi_reduction <add>, %20, %cst_7 [1] : vector<1x3xf32> to vector<1xf32>
    %22 = vector.shape_cast %21 : vector<1xf32> to vector<1x1xf32>
    %cst_8 = arith.constant dense<0.000000e+00> : vector<1xf32>
    %23 = vector.multi_reduction <add>, %15, %cst_8 [1] : vector<1x3xf32> to vector<1xf32>
    %24 = vector.shape_cast %23 : vector<1xf32> to vector<1x1xf32>
    %25 = math.log %22 : vector<1x1xf32>
    %26 = arith.addf %17, %25 : vector<1x1xf32>
    %cst_9 = arith.constant 3.000000e+00 : f32
    %27 = vector.broadcast %cst_9 : f32 to vector<1x1xf32>
    %28 = arith.mulf %27, %26 : vector<1x1xf32>
    %29 = arith.subf %24, %28 : vector<1x1xf32>
    %30 = vector.extract %29[0, 0] : f32 from vector<1x1xf32>
    %c0_10 = arith.constant 0 : index
    %31 = memref.load %arg1[%c0_10] : memref<3xf32, #tpu.memory_space<smem>>
    %c1_11 = arith.constant 1 : index
    %32 = memref.load %arg1[%c1_11] : memref<3xf32, #tpu.memory_space<smem>>
    %33 = arith.addf %31, %32 : f32
    %c2_12 = arith.constant 2 : index
    %34 = memref.load %arg1[%c2_12] : memref<3xf32, #tpu.memory_space<smem>>
    %35 = arith.addf %33, %34 : f32
    %36 = arith.addf %30, %35 : f32
    %c0_13 = arith.constant 0 : index
    %37 = memref.load %arg3[%c0_13] : memref<1xf32, #tpu.memory_space<smem>>
    memref.store %36, %arg3[%c0_13] : memref<1xf32, #tpu.memory_space<smem>>
    return
  }
}

</mosaic_0001>

<llo_original>
// kernel: torchnet_forward.1
$region0: #{torchnet_forward.1}
  #allocation0 [shape = 'u32[]', space=smem, size = 0x4, offset = 0x4, fixed_abs, tag = 'smem constant byte address 0x4 - core index']
  #allocation1 [shape = 'u32[72,128]{1,0:T(1,128)}', space=vmem, size = 0x9000, scoped, tag = 'internal scratch']
  %s0 = inlined_call_operand.vmem [shape: f32[3], index: 0, kind: input, shape index: {}]
  %s1 = inlined_call_operand.vmem [shape: f32[3], index: 1, kind: input, shape index: {}]
  %s2 = inlined_call_operand.hbm [shape: f32[3,3], index: 2, kind: input, shape index: {}]
  %s3 = inlined_call_operand.hbm [shape: f32[1], index: 3, kind: output, shape index: {}]
  %s4 = sld [smem:[#allocation0]]
  $region34: #{torchnet_forward.1} parent=0
    _
  %s6 = ssub.s32 1, %s4
  %s7 = scalar_select 0, %s6, %s4
  $region1: #{torchnet_forward.1} parent=0
    #allocation2 [shape = 'u8[512]{0}', space=smem, size = 0x200, scoped, tag = 'input window, operand 0, single buffered']
    #allocation3 [shape = 's32[1]{0}', space=sflag, size = 0x4, scoped, tag = 'scoped memory for torchnet_forward.1']
    #allocation4 [shape = 's32[1]{0}', space=sflag, size = 0x4, scoped, tag = 'scoped memory for torchnet_forward.1']
    #allocation5 [shape = 's32[1]{0}', space=sflag, size = 0x4, scoped, tag = 'scoped memory for torchnet_forward.1']
    #allocation6 [shape = 'u8[512]{0}', space=smem, size = 0x200, scoped, tag = 'input window, operand 1, single buffered']
    #allocation7 [shape = 's32[1]{0}', space=sflag, size = 0x4, scoped, tag = 'scoped memory for torchnet_forward.1']
    #allocation8 [shape = 'u8[2048]{0}', space=vmem, size = 0x800, scoped, tag = 'input window, operand 2, single buffered']
    #allocation9 [shape = 'u8[512]{0}', space=smem, size = 0x200, scoped, tag = 'output window, operand 0, single buffered']
    %8 = vsyncpa [#allocation5], 0
    %9 = vsyncpa [#allocation7], 0
    %10 = vsyncpa [#allocation3], 0
    %11 = vsyncpa [#allocation4], 0
    // Predicated region
    $region2: #{torchnet_forward.1} parent=1 // pred_check
      _
    $region3: #{torchnet_forward.1} parent=1 // pred_check_branch
      %13 = sbr.rel (0) target = $region5
    $region4: #{torchnet_forward.1} parent=1 // pred_region
      %15 = vsyncadd [#allocation5], 0
      %s17 = sshll.u32 %s0, 4
      %s18 = int_to_ptr.vmem [resolvable:$true] %s17
      %20 = dma.vmem_to_smem %s18, 16, [#allocation2], [#allocation5]
    $region5: #{torchnet_forward.1} parent=1 // pred_fallthru
      _
    // Predicated region
    $region6: #{torchnet_forward.1} parent=1 // pred_check
      _
    $region7: #{torchnet_forward.1} parent=1 // pred_check_branch
      %22 = sbr.rel (0) target = $region9
    $region8: #{torchnet_forward.1} parent=1 // pred_region
      %24 = vsyncadd [#allocation7], 0
      %s26 = sshll.u32 %s1, 4
      %s27 = int_to_ptr.vmem [resolvable:$true] %s26
      %29 = dma.vmem_to_smem %s27, 16, [#allocation6], [#allocation7]
    $region9: #{torchnet_forward.1} parent=1 // pred_fallthru
      _
    // Predicated region
    $region10: #{torchnet_forward.1} parent=1 // pred_check
      _
    $region11: #{torchnet_forward.1} parent=1 // pred_check_branch
      %31 = sbr.rel (0) target = $region13
    $region12: #{torchnet_forward.1} parent=1 // pred_region
      %33 = vsyncadd [#allocation3], 0
      %s35 = sshll.u32 %s2, 4
      %s36 = int_to_ptr.hbm [resolvable:$true] %s35
      %s37 = sshll.u32 [#allocation8], 4
      %s38 = int_to_ptr.vmem [resolvable:$true] %s37
      %40 = dma.hbm_to_vmem [thread:$0]  %s36, 64, %s38, [#allocation3]
    $region13: #{torchnet_forward.1} parent=1 // pred_fallthru
      _
    // Predicated region
    $region14: #{torchnet_forward.1} parent=1 // pred_check
      _
    $region15: #{torchnet_forward.1} parent=1 // pred_check_branch
      %42 = sbr.rel (0) target = $region17
    $region16: #{torchnet_forward.1} parent=1 // pred_region
      %44 = dma.done [#allocation5], 16
    $region17: #{torchnet_forward.1} parent=1 // pred_fallthru
      _
    // Predicated region
    $region18: #{torchnet_forward.1} parent=1 // pred_check
      _
    $region19: #{torchnet_forward.1} parent=1 // pred_check_branch
      %46 = sbr.rel (0) target = $region21
    $region20: #{torchnet_forward.1} parent=1 // pred_region
      %48 = dma.done [#allocation7], 16
    $region21: #{torchnet_forward.1} parent=1 // pred_fallthru
      _
    // Predicated region
    $region22: #{torchnet_forward.1} parent=1 // pred_check
      _
    $region23: #{torchnet_forward.1} parent=1 // pred_check_branch
      %50 = sbr.rel (0) target = $region25
    $region24: #{torchnet_forward.1} parent=1 // pred_region
      %52 = dma.done [#allocation3], 64
    $region25: #{torchnet_forward.1} parent=1 // pred_fallthru
      _
    %53 = sfence
    %s54 = sld [smem:[#allocation2]]
    %v55 = vld [vmem:[#allocation8] sm:$0x1]
    %v56 = vstv %s54
    %v57 = vmul.f32 %v56, %v55
    %s58 = sld [smem:[#allocation2 + $0x1]]
    %v59 = vld [vmem:[#allocation8 + $0x1] sm:$0x1]
    %v60 = vstv %s58
    %v61 = vmul.f32 %v60, %v59
    %v62 = vadd.f32 %v57, %v61
    %s63 = sld [smem:[#allocation2 + $0x2]]
    %v64 = vld [vmem:[#allocation8 + $0x2] sm:$0x1]
    %v65 = vstv %s63
    %v66 = vmul.f32 %v65, %v64
    %v67 = vadd.f32 %v62, %v66
    %v68 = vmax.f32 %v67, 0.0
    %vm69 = vcmask 16384
    %v70 = vsel %vm69, %v68, -inf
    %71 = vmax.xlane.f32.xlu0 %v70
    %v72 = vpop.xlane.xlu0 %71
    %v73 = vsub.f32 %v68, %v72
    %v74 = vmul.f32 %v73, 1.442695
    %v75 = vpow.pop %v74
    %v76 = vsel %vm69, %v75, 0.0
    %77 = vadd.xlane.f32.xlu0 %v76
    %v78 = vpop.xlane.xlu0 %77
    %v79 = vsel %vm69, %v68, 0.0
    %80 = vadd.xlane.f32.xlu0 %v79
    %v81 = vpop.xlane.xlu0 %80
    %v82 = vlog2.pop %v78
    %v83 = vmul.f32 %v82, 0.6931472
    %v84 = vadd.f32 %v72, %v83
    %v85 = vmul.f32 %v84, 3.0
    %v86 = vsub.f32 %v81, %v85
    %s87 = vtos %v86
    %s88 = sld [smem:[#allocation6]]
    %s89 = sld [smem:[#allocation6 + $0x1]]
    %s90 = sadd.f32 %s88, %s89
    %s91 = sld [smem:[#allocation6 + $0x2]]
    %s92 = sadd.f32 %s90, %s91
    %s93 = sadd.f32 %s87, %s92
    %s94 = scalar_lea.smem [#allocation9], 0
    %95 = sst [smem:[%s94]] %s93
    // Predicated region
    $region26: #{torchnet_forward.1} parent=1 // pred_check
      _
    $region27: #{torchnet_forward.1} parent=1 // pred_check_branch
      %97 = sbr.rel (0) target = $region29
    $region28: #{torchnet_forward.1} parent=1 // pred_region
      %99 = vsyncadd [#allocation4], 0
      %s101 = sshll.u32 %s3, 4
      %s102 = int_to_ptr.hbm [resolvable:$true] %s101
      %104 = dma.smem_to_hbm [#allocation9], 16, %s102, [#allocation4]
    $region29: #{torchnet_forward.1} parent=1 // pred_fallthru
      _
    // Predicated region
    $region30: #{torchnet_forward.1} parent=1 // pred_check
      _
    $region31: #{torchnet_forward.1} parent=1 // pred_check_branch
      %106 = sbr.rel (0) target = $region33
    $region32: #{torchnet_forward.1} parent=1 // pred_region
      %108 = dma.done [#allocation4], 16
    $region33: #{torchnet_forward.1} parent=1 // pred_fallthru
      _
    %109 = sfence
    %110 = vsyncpa [#allocation3], 1
    %111 = vsyncpa [#allocation4], 1
    %112 = vsyncpa [#allocation5], 1
    %113 = vsyncpa [#allocation7], 1

</llo_original>
